<compile_context>
chip_gen: v6e
topology: v6e:2x2x1
jax: 0.10.0
libtpu: 0.0.40
codegen_flags: <defaults>
</compile_context>

<pallas_src>
import functools

import jax
import jax.numpy as jnp
from jax.experimental import pallas as pl
from jax.experimental.pallas import tpu as pltpu


# ----------------------------------------------------------------------------
# Fused kernel:
#   acc_e = H @ loop_etype + b_etype + sum_{r <  R1} adj[r] @ (H @ W_etype[r])
#   acc_m = H @ loop_emb   + b_emb   + sum_{r >= R1} adj[r] @ (H @ W_emb[r-R1])
#   out   = acc_e @ Wfc.T[:Fout] + acc_m @ Wfc.T[Fout:]
# grid = (dst_tiles, R_total); relations (reduction) last, dst tiles parallel.
# ----------------------------------------------------------------------------
def _fused_kernel(adj_ref, hw_ref, init_e_ref, init_m_ref, wfct_ref, out_ref,
                  acc_e, acc_m, *, r1):
    r = pl.program_id(1)

    @pl.when(r == 0)
    def _():
        # Init accumulators with self-loop + bias (precomputed): no epilogue dot.
        acc_e[...] = init_e_ref[...]
        acc_m[...] = init_m_ref[...]

    # Steady state: one MXU matmul per (dst-tile, relation) block.
    msg = jnp.dot(adj_ref[...], hw_ref[...], preferred_element_type=jnp.float32)

    @pl.when(r < r1)
    def _():
        acc_e[...] += msg

    @pl.when(r >= r1)
    def _():
        acc_m[...] += msg

    @pl.when(r == pl.num_programs(1) - 1)
    def _():
        fout = acc_e.shape[1]
        # Fused concat + fc:  concat([acc_e, acc_m]) @ Wfc.T
        y = jnp.dot(acc_e[...], wfct_ref[:fout, :],
                    preferred_element_type=jnp.float32)
        y = y + jnp.dot(acc_m[...], wfct_ref[fout:, :],
                        preferred_element_type=jnp.float32)
        out_ref[...] = y.astype(out_ref.dtype)


def fused_edge_fusion(adj_all, hw_all, init_e, init_m, wfc_t, r1,
                      tile_m=256, matmul_dtype=jnp.float32):
    """adj_all: (R_total, N, N) [rel, dst, src]; hw_all: (R_total, N, Fout);
    init_e/init_m: (N, Fout) self-loop+bias; wfc_t: (2*Fout, Fout)."""
    R_total, N, _ = adj_all.shape
    Fout = hw_all.shape[2]
    assert wfc_t.shape == (2 * Fout, Fout)

    # dst-row tiling (degenerates to a single tile at toy N).  tile_m is kept
    # modest so 2x double-buffered adj tiles stay well under v7x's 64 MiB VMEM.
    # TODO(synk): for very large N also tile the src (contraction) axis and set
    # pltpu.CompilerParams(vmem_limit_bytes=...) explicitly.
    tm = N if N <= tile_m else max(8, (tile_m // 8) * 8)
    grid = (pl.cdiv(N, tm), R_total)

    if matmul_dtype != jnp.float32:
        # bf16 MXU inputs, f32 accumulation (halves the dominant adj HBM stream).
        adj_all = adj_all.astype(matmul_dtype)
        hw_all = hw_all.astype(matmul_dtype)

    kernel = functools.partial(_fused_kernel, r1=r1)
    return pl.pallas_call(
        kernel,
        out_shape=jax.ShapeDtypeStruct((N, Fout), jnp.float32),
        grid=grid,
        in_specs=[
            # adjacency streamed per (relation, dst-tile) block, relation squeezed
            pl.BlockSpec((pl.Squeezed(), tm, N), lambda i, r: (r, i, 0)),
            # pre-projected node features per relation (hoisted H @ W_r)
            pl.BlockSpec((pl.Squeezed(), N, Fout), lambda i, r: (r, 0, 0)),
            # self-loop + bias init terms (per dst tile)
            pl.BlockSpec((tm, Fout), lambda i, r: (i, 0)),
            pl.BlockSpec((tm, Fout), lambda i, r: (i, 0)),
            # fc weight (resident)
            pl.BlockSpec((2 * Fout, Fout), lambda i, r: (0, 0)),
        ],
        out_specs=pl.BlockSpec((tm, Fout), lambda i, r: (i, 0)),
        scratch_shapes=[
            pltpu.VMEM((tm, Fout), jnp.float32),   # acc_e
            pltpu.VMEM((tm, Fout), jnp.float32),   # acc_m
        ],
        compiler_params=pltpu.CompilerParams(
            dimension_semantics=("parallel", "arbitrary")),
    )(adj_all, hw_all, init_e, init_m, wfc_t)


# ----------------------------------------------------------------------------
# Glue: graph -> per-relation adjacency, hoisted projections, full forward.
# ----------------------------------------------------------------------------
def build_adjacency(num_rels, num_nodes, src, dst, rel, norm):
    """adj[r, v, u] += norm_e for each edge e = (u -> v) with relation r."""
    adj = jnp.zeros((num_rels, num_nodes, num_nodes), jnp.float32)
    return adj.at[rel, dst, src].add(norm)


def edge_fusion_gcn_forward(params, num_nodes,
                            src, dst, etypes, norm_mask, edge_mask,
                            nfeats, efeats,
                            first=True, relation=True,
                            matmul_dtype=jnp.float32):
    """Mirrors EdgeFusionGCN.forward (first=True, relation=True)."""
    N = num_nodes
    E = src.shape[0]
    Fedge = efeats.shape[1]
    R1 = params["R1"]

    # --- etype_conv adjacency: relations = etypes, norm = `mask` arg (E,1) ---
    adj_etype = build_adjacency(R1, N, src, dst, etypes, norm_mask[:, 0])

    # --- first=True edge duplication loop (semantics of dgl add_edges) ---
    # original edges: emb_etype zero-filled -> relation 0, norm = edge_mask
    adj_emb = build_adjacency(Fedge, N, src, dst,
                              jnp.zeros((E,), jnp.int32), edge_mask)
    # added edges: for each i, edges where edge_mask == 1, relation i,
    # norm = efeats[:, i]; unselected edges simply aren't added (norm 0).
    sel = (edge_mask == 1.0).astype(jnp.float32)
    for i in range(Fedge):  # static small loop (glue)
        adj_emb = adj_emb.at[jnp.full((E,), i, jnp.int32), dst, src].add(
            sel * efeats[:, i])

    # Stack both convs' relations into one relation axis.
    adj_all = jnp.concatenate([adj_etype, adj_emb], axis=0)      # (R1+Fedge, N, N)
    w_all = jnp.concatenate([params["w_etype"], params["w_emb"]], axis=0)

    # Hoisted projection: ONE batched matmul for all relations (was one tiny
    # K=Fin matmul per grid step inside the kernel).
    hw_all = jnp.einsum("nf,rfo->rno", nfeats, w_all)            # (R_total, N, Fout)

    # Self-loop + bias terms, computed once, used to init the accumulators.
    init_e = nfeats @ params["loop_etype"] + params["b_etype"][None, :]
    init_m = nfeats @ params["loop_emb"] + params["b_emb"][None, :]

    if relation:
        out = fused_edge_fusion(adj_all, hw_all, init_e, init_m,
                                params["wfc_t"], r1=R1,
                                matmul_dtype=matmul_dtype)
    else:
        # TODO(synk): relation=False path (fc over x_embedding only) not exercised here.
        out = init_m + jnp.einsum("rvu,rub->vb", adj_emb,
                                  hw_all[R1:])
    return out


def relconv_ref(adj, h, w, wloop, bias):
    hw = jnp.einsum("nf,rfo->rno", h, w)
    msg = jnp.einsum("rvu,ruo->vo", adj, hw)
    return msg + h @ wloop + bias


# ----------------------------------------------------------------------------
if __name__ == "__main__":
    # small shapes consistent with the module
    N = 16            # nodes
    E = 24            # edges
    Fin = 8           # in_node_feats
    Fout = 16         # out_node_feats
    Fedge = 4         # in_edge_feats
    Rtypes = 3        # in_edge_types

    key = jax.random.PRNGKey(0)
    ks = jax.random.split(key, 12)

    params = {
        "R1": Rtypes,
        "w_etype": 0.1 * jax.random.normal(ks[0], (Rtypes, Fin, Fout), jnp.float32),
        "loop_etype": 0.1 * jax.random.normal(ks[1], (Fin, Fout), jnp.float32),
        "b_etype": 0.1 * jax.random.normal(ks[2], (Fout,), jnp.float32),
        "w_emb": 0.1 * jax.random.normal(ks[3], (Fedge, Fin, Fout), jnp.float32),
        "loop_emb": 0.1 * jax.random.normal(ks[4], (Fin, Fout), jnp.float32),
        "b_emb": 0.1 * jax.random.normal(ks[5], (Fout,), jnp.float32),
        # torch fc weight is (Fout, 2*Fout); we pass its transpose
        "wfc_t": (0.1 * jax.random.normal(ks[6], (Fout, 2 * Fout), jnp.float32)).T,
    }

    src = jax.random.randint(ks[7], (E,), 0, N, jnp.int32)
    dst = jax.random.randint(ks[8], (E,), 0, N, jnp.int32)
    etypes = jax.random.randint(ks[9], (E,), 0, Rtypes, jnp.int32)
    norm_mask = jax.random.uniform(ks[10], (E, 1), jnp.float32)              # `mask` arg (norm)
    edge_mask = jax.random.bernoulli(ks[11], 0.6, (E,)).astype(jnp.float32)  # graph.edata['edge_mask']
    nfeats = jax.random.normal(jax.random.PRNGKey(1), (N, Fin), jnp.float32)
    efeats = jax.random.uniform(jax.random.PRNGKey(2), (E, Fedge), jnp.float32)

    # --- f32 path ---
    out = edge_fusion_gcn_forward(params, N, src, dst, etypes, norm_mask,
                                  edge_mask, nfeats, efeats)
    out = jax.block_until_ready(out)

    # reference check (pure JAX)
    adj_etype = build_adjacency(Rtypes, N, src, dst, etypes, norm_mask[:, 0])
    adj_emb = build_adjacency(Fedge, N, src, dst, jnp.zeros((E,), jnp.int32), edge_mask)
    sel = (edge_mask == 1.0).astype(jnp.float32)
    for i in range(Fedge):
        adj_emb = adj_emb.at[jnp.full((E,), i, jnp.int32), dst, src].add(sel * efeats[:, i])
    xe_ref = relconv_ref(adj_etype, nfeats, params["w_etype"],
                         params["loop_etype"], params["b_etype"])
    xm_ref = relconv_ref(adj_emb, nfeats, params["w_emb"],
                         params["loop_emb"], params["b_emb"])
    ref = jnp.concatenate([xe_ref, xm_ref], axis=1) @ params["wfc_t"]

    assert out.shape == (N, Fout)
    assert jnp.allclose(out, ref, atol=1e-4, rtol=1e-4)

    # --- bf16 MXU-input path (f32 accumulation), loose tolerance ---
    out_bf16 = edge_fusion_gcn_forward(params, N, src, dst, etypes, norm_mask,
                                       edge_mask, nfeats, efeats,
                                       matmul_dtype=jnp.bfloat16)
    out_bf16 = jax.block_until_ready(out_bf16)
    assert jnp.allclose(out_bf16, ref, atol=5e-2, rtol=5e-2)

    print("KERNEL_OK")
</pallas_src>

<mosaic_0001>
module attributes {stable_mosaic.version = 11 : i64} {
  func.func @_fused_kernel(%arg0: i32, %arg1: i32, %arg2: memref<1x16x16xf32, #tpu.memory_space<vmem>>, %arg3: memref<1x16x16xf32, #tpu.memory_space<vmem>>, %arg4: memref<16x16xf32, #tpu.memory_space<vmem>>, %arg5: memref<16x16xf32, #tpu.memory_space<vmem>>, %arg6: memref<32x16xf32, #tpu.memory_space<vmem>>, %arg7: memref<16x16xf32, #tpu.memory_space<vmem>>, %arg8: memref<16x16xf32, #tpu.memory_space<vmem>>, %arg9: memref<16x16xf32, #tpu.memory_space<vmem>>) attributes {dimension_semantics = [#tpu.dimension_semantics<parallel>, #tpu.dimension_semantics<arbitrary>], iteration_bounds = array<i64: 1, 7>, scalar_prefetch = 0 : i64, scratch_operands = 2 : i64, tpu.core_type = #tpu.core_type<tc>, window_params = [{transform_indices = @transform_0, window_bounds = array<i64: 1, 16, 16>}, {transform_indices = @transform_1, window_bounds = array<i64: 1, 16, 16>}, {transform_indices = @transform_2, window_bounds = array<i64: 16, 16>}, {transform_indices = @transform_3, window_bounds = array<i64: 16, 16>}, {pipeline_mode = #tpu.pipeline_mode<synchronous>, transform_indices = @transform_4, window_bounds = array<i64: 32, 16>}, {transform_indices = @transform_5, window_bounds = array<i64: 16, 16>}]} {
    %c0_i32 = arith.constant 0 : i32
    %0 = arith.cmpi eq, %arg1, %c0_i32 : i32
    %1 = arith.extui %0 : i1 to i32
    %c0_i32_0 = arith.constant 0 : i32
    %2 = arith.cmpi ne, %1, %c0_i32_0 : i32
    scf.if %2 {
      %c0_10 = arith.constant 0 : index
      %c0_11 = arith.constant 0 : index
      %17 = vector.load %arg4[%c0_10, %c0_11] : memref<16x16xf32, #tpu.memory_space<vmem>>, vector<16x16xf32>
      %c0_12 = arith.constant 0 : index
      %c0_13 = arith.constant 0 : index
      %18 = vector.load %arg8[%c0_12, %c0_13] : memref<16x16xf32, #tpu.memory_space<vmem>>, vector<16x16xf32>
      tpu.vector_store %arg8[%c0_12, %c0_13], %17 {strides = array<i32>} : memref<16x16xf32, #tpu.memory_space<vmem>>, vector<16x16xf32>,
      %c0_14 = arith.constant 0 : index
      %c0_15 = arith.constant 0 : index
      %19 = vector.load %arg5[%c0_14, %c0_15] : memref<16x16xf32, #tpu.memory_space<vmem>>, vector<16x16xf32>
      %c0_16 = arith.constant 0 : index
      %c0_17 = arith.constant 0 : index
      %20 = vector.load %arg9[%c0_16, %c0_17] : memref<16x16xf32, #tpu.memory_space<vmem>>, vector<16x16xf32>
      tpu.vector_store %arg9[%c0_16, %c0_17], %19 {strides = array<i32>} : memref<16x16xf32, #tpu.memory_space<vmem>>, vector<16x16xf32>,
    } else {
    }
    %c0 = arith.constant 0 : index
    %c0_1 = arith.constant 0 : index
    %c0_2 = arith.constant 0 : index
    %3 = vector.load %arg2[%c0, %c0_1, %c0_2] : memref<1x16x16xf32, #tpu.memory_space<vmem>>, vector<1x16x16xf32>
    %4 = vector.shape_cast %3 : vector<1x16x16xf32> to vector<16x16xf32>
    %c0_3 = arith.constant 0 : index
    %c0_4 = arith.constant 0 : index
    %c0_5 = arith.constant 0 : index
    %5 = vector.load %arg3[%c0_3, %c0_4, %c0_5] : memref<1x16x16xf32, #tpu.memory_space<vmem>>, vector<1x16x16xf32>
    %6 = vector.shape_cast %5 : vector<1x16x16xf32> to vector<16x16xf32>
    %cst = arith.constant dense<0.000000e+00> : vector<16x16xf32>
    %7 = tpu.matmul %4, %6, %cst {dimension_numbers = #tpu.dot_dimension_numbers<[1], [0], [0], [1], [0, 0, 1, 1], [], []>} : vector<16x16xf32>, vector<16x16xf32>, vector<16x16xf32> -> vector<16x16xf32>
    %c3_i32 = arith.constant 3 : i32
    %8 = arith.cmpi slt, %arg1, %c3_i32 : i32
    %9 = arith.extui %8 : i1 to i32
    %c0_i32_6 = arith.constant 0 : i32
    %10 = arith.cmpi ne, %9, %c0_i32_6 : i32
    scf.if %10 {
      %c0_10 = arith.constant 0 : index
      %c0_11 = arith.constant 0 : index
      %17 = vector.load %arg8[%c0_10, %c0_11] : memref<16x16xf32, #tpu.memory_space<vmem>>, vector<16x16xf32>
      %18 = arith.addf %17, %7 : vector<16x16xf32>
      %c0_12 = arith.constant 0 : index
      %c0_13 = arith.constant 0 : index
      %19 = vector.load %arg8[%c0_12, %c0_13] : memref<16x16xf32, #tpu.memory_space<vmem>>, vector<16x16xf32>
      tpu.vector_store %arg8[%c0_12, %c0_13], %18 {strides = array<i32>} : memref<16x16xf32, #tpu.memory_space<vmem>>, vector<16x16xf32>,
    } else {
    }
    %c3_i32_7 = arith.constant 3 : i32
    %11 = arith.cmpi sge, %arg1, %c3_i32_7 : i32
    %12 = arith.extui %11 : i1 to i32
    %c0_i32_8 = arith.constant 0 : i32
    %13 = arith.cmpi ne, %12, %c0_i32_8 : i32
    scf.if %13 {
      %c0_10 = arith.constant 0 : index
      %c0_11 = arith.constant 0 : index
      %17 = vector.load %arg9[%c0_10, %c0_11] : memref<16x16xf32, #tpu.memory_space<vmem>>, vector<16x16xf32>
      %18 = arith.addf %17, %7 : vector<16x16xf32>
      %c0_12 = arith.constant 0 : index
      %c0_13 = arith.constant 0 : index
      %19 = vector.load %arg9[%c0_12, %c0_13] : memref<16x16xf32, #tpu.memory_space<vmem>>, vector<16x16xf32>
      tpu.vector_store %arg9[%c0_12, %c0_13], %18 {strides = array<i32>} : memref<16x16xf32, #tpu.memory_space<vmem>>, vector<16x16xf32>,
    } else {
    }
    %c6_i32 = arith.constant 6 : i32
    %14 = arith.cmpi eq, %arg1, %c6_i32 : i32
    %15 = arith.extui %14 : i1 to i32
    %c0_i32_9 = arith.constant 0 : i32
    %16 = arith.cmpi ne, %15, %c0_i32_9 : i32
    scf.if %16 {
      %c0_10 = arith.constant 0 : index
      %c0_11 = arith.constant 0 : index
      %17 = vector.load %arg8[%c0_10, %c0_11] : memref<16x16xf32, #tpu.memory_space<vmem>>, vector<16x16xf32>
      %c0_12 = arith.constant 0 : index
      %c0_13 = arith.constant 0 : index
      %18 = vector.load %arg6[%c0_12, %c0_13] : memref<32x16xf32, #tpu.memory_space<vmem>>, vector<16x16xf32>
      %cst_14 = arith.constant dense<0.000000e+00> : vector<16x16xf32>
      %19 = tpu.matmul %17, %18, %cst_14 {dimension_numbers = #tpu.dot_dimension_numbers<[1], [0], [0], [1], [0, 0, 1, 1], [], []>} : vector<16x16xf32>, vector<16x16xf32>, vector<16x16xf32> -> vector<16x16xf32>
      %c0_15 = arith.constant 0 : index
      %c0_16 = arith.constant 0 : index
      %20 = vector.load %arg9[%c0_15, %c0_16] : memref<16x16xf32, #tpu.memory_space<vmem>>, vector<16x16xf32>
      %c16 = arith.constant 16 : index
      %c0_17 = arith.constant 0 : index
      %21 = vector.load %arg6[%c16, %c0_17] : memref<32x16xf32, #tpu.memory_space<vmem>>, vector<16x16xf32>
      %cst_18 = arith.constant dense<0.000000e+00> : vector<16x16xf32>
      %22 = tpu.matmul %20, %21, %cst_18 {dimension_numbers = #tpu.dot_dimension_numbers<[1], [0], [0], [1], [0, 0, 1, 1], [], []>} : vector<16x16xf32>, vector<16x16xf32>, vector<16x16xf32> -> vector<16x16xf32>
      %23 = arith.addf %19, %22 : vector<16x16xf32>
      %c0_19 = arith.constant 0 : index
      %c0_20 = arith.constant 0 : index
      %24 = vector.load %arg7[%c0_19, %c0_20] : memref<16x16xf32, #tpu.memory_space<vmem>>, vector<16x16xf32>
      tpu.vector_store %arg7[%c0_19, %c0_20], %23 {strides = array<i32>} : memref<16x16xf32, #tpu.memory_space<vmem>>, vector<16x16xf32>,
    } else {
    }
    return
  }
  func.func @transform_0(%arg0: i32, %arg1: i32) -> (i32, i32, i32) {
    %c0_i32 = arith.constant 0 : i32
    %c0_i32_0 = arith.constant 0 : i32
    return %arg1, %arg0, %c0_i32 : i32, i32, i32
  }
  func.func @transform_1(%arg0: i32, %arg1: i32) -> (i32, i32, i32) {
    %c0_i32 = arith.constant 0 : i32
    %c0_i32_0 = arith.constant 0 : i32
    %c0_i32_1 = arith.constant 0 : i32
    return %arg1, %c0_i32, %c0_i32_0 : i32, i32, i32
  }
  func.func @transform_2(%arg0: i32, %arg1: i32) -> (i32, i32) {
    %c0_i32 = arith.constant 0 : i32
    %c0_i32_0 = arith.constant 0 : i32
    return %arg0, %c0_i32 : i32, i32
  }
  func.func @transform_3(%arg0: i32, %arg1: i32) -> (i32, i32) {
    %c0_i32 = arith.constant 0 : i32
    %c0_i32_0 = arith.constant 0 : i32
    return %arg0, %c0_i32 : i32, i32
  }
  func.func @transform_4(%arg0: i32, %arg1: i32) -> (i32, i32) {
    %c0_i32 = arith.constant 0 : i32
    %c0_i32_0 = arith.constant 0 : i32
    %c0_i32_1 = arith.constant 0 : i32
    return %c0_i32, %c0_i32_0 : i32, i32
  }
  func.func @transform_5(%arg0: i32, %arg1: i32) -> (i32, i32) {
    %c0_i32 = arith.constant 0 : i32
    %c0_i32_0 = arith.constant 0 : i32
    return %arg0, %c0_i32 : i32, i32
  }
}

</mosaic_0001>

<llo_original>
// kernel: tpu_custom_call.1
$region0: #{tpu_custom_call.1}
  #allocation0 [shape = 'u32[]', space=smem, size = 0x4, offset = 0x4, fixed_abs, tag = 'smem constant byte address 0x4 - core index']
  #allocation1 [shape = 'u32[144,128]{1,0:T(1,128)}', space=vmem, size = 0x12000, scoped, tag = 'internal scratch']
  #allocation2 [shape = 'f32[16,16]{1,0:T(8,128)}', space=vmem, size = 0x2000, scoped, tag = 'scratch operand']
  #allocation3 [shape = 'f32[16,16]{1,0:T(8,128)}', space=vmem, size = 0x2000, scoped, tag = 'scratch operand']
  %s0 = inlined_call_operand.hbm [shape: f32[7,16,16], index: 0, kind: input, shape index: {}]
  %s1 = inlined_call_operand.hbm [shape: f32[7,16,16], index: 1, kind: input, shape index: {}]
  %s2 = inlined_call_operand.vmem [shape: f32[16,16], index: 2, kind: input, shape index: {}]
  %s3 = inlined_call_operand.vmem [shape: f32[16,16], index: 3, kind: input, shape index: {}]
  %s4 = inlined_call_operand.vmem [shape: f32[32,16], index: 4, kind: input, shape index: {}]
  %s5 = inlined_call_operand.hbm [shape: f32[16,16], index: 5, kind: output, shape index: {}]
  %s6 = sld [smem:[#allocation0]]
  $region77: #{tpu_custom_call.1} parent=0
    _
  %s8 = ssub.s32 1, %s6
  %s9 = scalar_select 0, %s8, %s6
  $region1: #{tpu_custom_call.1} parent=0
    #allocation4 [shape = 'u8[16384]{0}', space=vmem, size = 0x4000, scoped, tag = 'input window, operand 0']
    #allocation5 [shape = 's32[2]{0}', space=sflag, size = 0x8, scoped, tag = 'scoped memory for tpu_custom_call.1']
    #allocation6 [shape = 's32[2]{0}', space=sflag, size = 0x8, scoped, tag = 'scoped memory for tpu_custom_call.1']
    #allocation7 [shape = 'u8[16384]{0}', space=vmem, size = 0x4000, scoped, tag = 'input window, operand 1']
    #allocation8 [shape = 's32[2]{0}', space=sflag, size = 0x8, scoped, tag = 'scoped memory for tpu_custom_call.1']
    #allocation9 [shape = 'u8[8192]{0}', space=vmem, size = 0x2000, scoped, tag = 'output window, operand 0, single buffered']
    %10 = vsyncpa [#allocation5], 0
    %s11 = scalar_lea.sflag [#allocation5], 1
    %12 = vsyncpa %s11, 0
    %13 = vsyncpa [#allocation8], 0
    %s14 = scalar_lea.sflag [#allocation8], 1
    %15 = vsyncpa %s14, 0
    %16 = vsyncpa [#allocation6], 0
    loop: start=0, step=1, limit=9
    $region2: #{tpu_custom_call.1} parent=1 // loop_pre_header
      _
    $region3: #{tpu_custom_call.1} parent=1 // loop_header
      %s18 = sphi 0, %s22
      %p19 = scmp.ge.s32.totalorder %s18, 9
      %s25 = sphi 0, %s37
      %s26 = sphi 0, %s33
      %s27 = sphi 0, %s25
      %s28 = sphi 0, %s26
      %s29 = sphi 0, %s27
      %s30 = sphi 0, %s28
      %s42 = sphi 0, %s44
      %s45 = sphi 0, %s42
      %s46 = sphi 0, %s45
      %s62 = sphi 0, %s46
      %s68 = sphi 0, %s70
      %s71 = sphi 0, %s68
      %s72 = sphi 0, %s71
      %s88 = sphi 0, %s72
      %s94 = sphi 0, %s96
      %s97 = sphi 0, %s94
      %s98 = sphi 0, %s97
      %s114 = sphi 0, %s98
      %s120 = sphi 0, %s122
      %s123 = sphi 0, %s120
      %s124 = sphi 0, %s123
      %s140 = sphi 0, %s124
      %s144 = sphi 0, %s144
      %s146 = sphi 0, %s144
      %s147 = sphi 0, %s146
      %s161 = sphi 0, %s147
      %s167 = sphi 0, %s169
      %s170 = sphi 0, %s167
      %s171 = sphi 0, %s170
      %s187 = sphi 0, %s171
    $region4: #{tpu_custom_call.1} parent=1 // loop_header_branch
      %21 = sbr.rel (%p19) target = $region8
    $region5: #{tpu_custom_call.1} parent=1 // loop_body
      %s23 = ssub.s32 %s18, 1
      %s24 = ssub.s32 %s18, 2
      %s31 = sadd.s32 1, %s26
      %p32 = scmp.ge.s32.totalorder %s31, 7
      %s33 = scalar_select %p32, 0, %s31
      %s34 = sadd.s32 1, %s25
      %s35 = scalar_select %p32, %s34, %s25
      %p36 = scmp.ge.s32.totalorder %s35, 1
      %s37 = scalar_select %p36, 0, %s35
      %s38 = ssub.s32 %s26, %s33
      %s39 = ssub.s32 %s25, %s37
      %s40 = sor.u32 %s38, %s39
      %p41 = scmp.eq.s32.totalorder %s40, 0
      %s43 = sadd.s32 %s42, 1
      %s44 = scalar_select %p41, %s42, %s43
      %p47 = pneg %p41
      %p48 = scmp.eq.s32.totalorder %s18, 6
      %p49 = por %p47, %p48
      %p50 = scmp.ne.s32.totalorder %s42, %s45
      %p51 = scmp.eq.s32.totalorder %s18, 0
      %p52 = por %p50, %p51
      %p53 = scmp.ne.s32.totalorder %s42, %s45
      %p54 = scmp.eq.s32.totalorder %s23, 6
      %p55 = por %p53, %p54
      %p56 = scmp.ne.s32.totalorder %s45, %s46
      %p57 = scmp.eq.s32.totalorder %s23, 0
      %p58 = por %p56, %p57
      %p59 = scmp.ne.s32.totalorder %s45, %s46
      %p60 = scmp.eq.s32.totalorder %s24, 6
      %p61 = por %p59, %p60
      %p63 = scmp.ne.s32.totalorder %s46, %s62
      %p64 = scmp.eq.s32.totalorder %s24, 0
      %p65 = por %p63, %p64
      %s66 = ssub.s32 %s26, %s33
      %p67 = scmp.eq.s32.totalorder %s66, 0
      %s69 = sadd.s32 %s68, 1
      %s70 = scalar_select %p67, %s68, %s69
      %p73 = pneg %p67
      %p74 = scmp.eq.s32.totalorder %s18, 6
      %p75 = por %p73, %p74
      %p76 = scmp.ne.s32.totalorder %s68, %s71
      %p77 = scmp.eq.s32.totalorder %s18, 0
      %p78 = por %p76, %p77
      %p79 = scmp.ne.s32.totalorder %s68, %s71
      %p80 = scmp.eq.s32.totalorder %s23, 6
      %p81 = por %p79, %p80
      %p82 = scmp.ne.s32.totalorder %s71, %s72
      %p83 = scmp.eq.s32.totalorder %s23, 0
      %p84 = por %p82, %p83
      %p85 = scmp.ne.s32.totalorder %s71, %s72
      %p86 = scmp.eq.s32.totalorder %s24, 6
      %p87 = por %p85, %p86
      %p89 = scmp.ne.s32.totalorder %s72, %s88
      %p90 = scmp.eq.s32.totalorder %s24, 0
      %p91 = por %p89, %p90
      %s92 = ssub.s32 %s25, %s37
      %p93 = scmp.eq.s32.totalorder %s92, 0
      %s95 = sadd.s32 %s94, 1
      %s96 = scalar_select %p93, %s94, %s95
      %p99 = pneg %p93
      %p100 = scmp.eq.s32.totalorder %s18, 6
      %p101 = por %p99, %p100
      %p102 = scmp.ne.s32.totalorder %s94, %s97
      %p103 = scmp.eq.s32.totalorder %s18, 0
      %p104 = por %p102, %p103
      %p105 = scmp.ne.s32.totalorder %s94, %s97
      %p106 = scmp.eq.s32.totalorder %s23, 6
      %p107 = por %p105, %p106
      %p108 = scmp.ne.s32.totalorder %s97, %s98
      %p109 = scmp.eq.s32.totalorder %s23, 0
      %p110 = por %p108, %p109
      %p111 = scmp.ne.s32.totalorder %s97, %s98
      %p112 = scmp.eq.s32.totalorder %s24, 6
      %p113 = por %p111, %p112
      %p115 = scmp.ne.s32.totalorder %s98, %s114
      %p116 = scmp.eq.s32.totalorder %s24, 0
      %p117 = por %p115, %p116
      %s118 = ssub.s32 %s25, %s37
      %p119 = scmp.eq.s32.totalorder %s118, 0
      %s121 = sadd.s32 %s120, 1
      %s122 = scalar_select %p119, %s120, %s121
      %p125 = pneg %p119
      %p126 = scmp.eq.s32.totalorder %s18, 6
      %p127 = por %p125, %p126
      %p128 = scmp.ne.s32.totalorder %s120, %s123
      %p129 = scmp.eq.s32.totalorder %s18, 0
      %p130 = por %p128, %p129
      %p131 = scmp.ne.s32.totalorder %s120, %s123
      %p132 = scmp.eq.s32.totalorder %s23, 6
      %p133 = por %p131, %p132
      %p134 = scmp.ne.s32.totalorder %s123, %s124
      %p135 = scmp.eq.s32.totalorder %s23, 0
      %p136 = por %p134, %p135
      %p137 = scmp.ne.s32.totalorder %s123, %s124
      %p138 = scmp.eq.s32.totalorder %s24, 6
      %p139 = por %p137, %p138
      %p141 = scmp.ne.s32.totalorder %s124, %s140
      %p142 = scmp.eq.s32.totalorder %s24, 0
      %p143 = por %p141, %p142
      %s145 = sadd.s32 %s144, 1
      %p148 = scmp.eq.s32.totalorder %s18, 6
      %p149 = scmp.ne.s32.totalorder %s144, %s146
      %p150 = scmp.eq.s32.totalorder %s18, 0
      %p151 = por %p149, %p150
      %p152 = scmp.ne.s32.totalorder %s144, %s146
      %p153 = scmp.eq.s32.totalorder %s23, 6
      %p154 = por %p152, %p153
      %p155 = scmp.ne.s32.totalorder %s146, %s147
      %p156 = scmp.eq.s32.totalorder %s23, 0
      %p157 = por %p155, %p156
      %p158 = scmp.ne.s32.totalorder %s146, %s147
      %p159 = scmp.eq.s32.totalorder %s24, 6
      %p160 = por %p158, %p159
      %p162 = scmp.ne.s32.totalorder %s147, %s161
      %p163 = scmp.eq.s32.totalorder %s24, 0
      %p164 = por %p162, %p163
      %s165 = ssub.s32 %s25, %s37
      %p166 = scmp.eq.s32.totalorder %s165, 0
      %s168 = sadd.s32 %s167, 1
      %s169 = scalar_select %p166, %s167, %s168
      %p172 = pneg %p166
      %p173 = scmp.eq.s32.totalorder %s18, 6
      %p174 = por %p172, %p173
      %p175 = scmp.ne.s32.totalorder %s167, %s170
      %p176 = scmp.eq.s32.totalorder %s18, 0
      %p177 = por %p175, %p176
      %p178 = scmp.ne.s32.totalorder %s167, %s170
      %p179 = scmp.eq.s32.totalorder %s23, 6
      %p180 = por %p178, %p179
      %p181 = scmp.ne.s32.totalorder %s170, %s171
      %p182 = scmp.eq.s32.totalorder %s23, 0
      %p183 = por %p181, %p182
      %p184 = scmp.ne.s32.totalorder %s170, %s171
      %p185 = scmp.eq.s32.totalorder %s24, 6
      %p186 = por %p184, %p185
      %p188 = scmp.ne.s32.totalorder %s171, %s187
      %p189 = scmp.eq.s32.totalorder %s24, 0
      %p190 = por %p188, %p189
      %p191 = scmp.le.s32.totalorder 1, %s18
      %p192 = scmp.lt.s32.totalorder %s18, 8
      %p193 = pnand %p191, %p192
      %p194 = pneg %p193
      // Predicated region
      $region9: #{tpu_custom_call.1} parent=5 // pred_check
        _
      $region10: #{tpu_custom_call.1} parent=5 // pred_check_branch
        %196 = sbr.rel (%p193) target = $region12
      $region11: #{tpu_custom_call.1} parent=5 // pred_region
        %s197 = ssub.s32 %s18, 1
        // Predicated region
        $region13: #{tpu_custom_call.1} parent=11 // pred_check
          %p198 = pneg %p110
        $region14: #{tpu_custom_call.1} parent=11 // pred_check_branch
          %200 = sbr.rel (%p198) target = $region16
        $region15: #{tpu_custom_call.1} parent=11 // pred_region
          %s201 = smul.u32 2, %s27
          %p202 = scmp.lt.s32.totalorder %s201, 1
          %s203 = scalar_select %p202, %s201, 1
          %s204 = smul.addr %s203, 8
          %s205 = scalar_lea.vmem %s2, %s204
          %s206 = smul.u32 2, %s27
        $region16: #{tpu_custom_call.1} parent=11 // pred_fallthru
          _
        // Predicated region
        $region17: #{tpu_custom_call.1} parent=11 // pred_check
          %p207 = pneg %p136
        $region18: #{tpu_custom_call.1} parent=11 // pred_check_branch
          %209 = sbr.rel (%p207) target = $region20
        $region19: #{tpu_custom_call.1} parent=11 // pred_region
          %s210 = smul.u32 2, %s27
          %p211 = scmp.lt.s32.totalorder %s210, 1
          %s212 = scalar_select %p211, %s210, 1
          %s213 = smul.addr %s212, 8
          %s214 = scalar_lea.vmem %s3, %s213
          %s215 = smul.u32 2, %s27
        $region20: #{tpu_custom_call.1} parent=11 // pred_fallthru
          _
        // Predicated region
        $region21: #{tpu_custom_call.1} parent=11 // pred_check
          %p216 = pneg %p157
        $region22: #{tpu_custom_call.1} parent=11 // pred_check_branch
          %218 = sbr.rel (%p216) target = $region24
        $region23: #{tpu_custom_call.1} parent=11 // pred_region
          _
        $region24: #{tpu_custom_call.1} parent=11 // pred_fallthru
          _
      $region12: #{tpu_custom_call.1} parent=5 // pred_fallthru
        _
      %p219 = scmp.lt.s32.totalorder %s18, 7
      // Predicated region
      $region25: #{tpu_custom_call.1} parent=5 // pred_check
        %p220 = pneg %p219
      $region26: #{tpu_custom_call.1} parent=5 // pred_check_branch
        %222 = sbr.rel (%p220) target = $region28
      $region27: #{tpu_custom_call.1} parent=5 // pred_region
        // Predicated region
        $region29: #{tpu_custom_call.1} parent=27 // pred_check
          %p223 = pneg %p52
        $region30: #{tpu_custom_call.1} parent=27 // pred_check_branch
          %225 = sbr.rel (%p223) target = $region32
        $region31: #{tpu_custom_call.1} parent=27 // pred_region
          %s226 = sand.u32 %s42, 1
          %s227 = scalar_lea.sflag [#allocation5], %s226
          %s228 = sand.u32 %s42, 1
          %s229 = smul.addr %s228, 16
          %s230 = scalar_lea.vmem [#allocation4], %s229
          %s231 = smul.u32 2, %s25
          %s233 = ssub.s32 256, 256
          %234 = vsyncadd %s227, %s233
          %s235 = smul.addr %s26, 2
          %s236 = sadd.s32 %s231, %s235
          %s237 = smul.addr %s236, 128
          %s238 = scalar_lea.hbm %s0, %s237
          %s239 = sshll.u32 %s230, 4
          %s240 = int_to_ptr.vmem [resolvable:$true] %s239
          %245 = dma.hbm_to_vmem [thread:$0]  %s238, 256, %s240, %s227, 128, 128, 8
        $region32: #{tpu_custom_call.1} parent=27 // pred_fallthru
          _
        // Predicated region
        $region33: #{tpu_custom_call.1} parent=27 // pred_check
          %p246 = pneg %p78
        $region34: #{tpu_custom_call.1} parent=27 // pred_check_branch
          %248 = sbr.rel (%p246) target = $region36
        $region35: #{tpu_custom_call.1} parent=27 // pred_region
          %s249 = sand.u32 %s68, 1
          %s250 = scalar_lea.sflag [#allocation8], %s249
          %s251 = sand.u32 %s68, 1
          %s252 = smul.addr %s251, 16
          %s253 = scalar_lea.vmem [#allocation7], %s252
          %s255 = ssub.s32 256, 256
          %256 = vsyncadd %s250, %s255
          %s257 = smul.addr %s26, 2
          %s258 = smul.addr %s257, 128
          %s259 = scalar_lea.hbm %s1, %s258
          %s260 = sshll.u32 %s253, 4
          %s261 = int_to_ptr.vmem [resolvable:$true] %s260
          %266 = dma.hbm_to_vmem [thread:$0]  %s259, 256, %s261, %s250, 128, 128, 8
        $region36: #{tpu_custom_call.1} parent=27 // pred_fallthru
          _
      $region28: #{tpu_custom_call.1} parent=5 // pred_fallthru
        _
      %p267 = scmp.le.s32.totalorder 1, %s18
      %p268 = scmp.lt.s32.totalorder %s18, 8
      %p269 = pnand %p267, %p268
      %p270 = pneg %p269
      // Predicated region
      $region37: #{tpu_custom_call.1} parent=5 // pred_check
        _
      $region38: #{tpu_custom_call.1} parent=5 // pred_check_branch
        %272 = sbr.rel (%p269) target = $region40
      $region39: #{tpu_custom_call.1} parent=5 // pred_region
        %s273 = ssub.s32 %s18, 1
        %s274 = sand.u32 %s45, 1
        %s275 = scalar_lea.sflag [#allocation5], %s274
        %s276 = sand.u32 %s45, 1
        %s277 = smul.addr %s276, 16
        %s278 = scalar_lea.vmem [#allocation4], %s277
        // Predicated region
        $region41: #{tpu_custom_call.1} parent=39 // pred_check
          %p279 = pneg %p58
        $region42: #{tpu_custom_call.1} parent=39 // pred_check_branch
          %281 = sbr.rel (%p279) target = $region44
        $region43: #{tpu_custom_call.1} parent=39 // pred_region
          %282 = dma.done %s275, 256
        $region44: #{tpu_custom_call.1} parent=39 // pred_fallthru
          _
        %s283 = sand.u32 %s71, 1
        %s284 = scalar_lea.sflag [#allocation8], %s283
        %s285 = sand.u32 %s71, 1
        %s286 = smul.addr %s285, 16
        %s287 = scalar_lea.vmem [#allocation7], %s286
        // Predicated region
        $region45: #{tpu_custom_call.1} parent=39 // pred_check
          %p288 = pneg %p84
        $region46: #{tpu_custom_call.1} parent=39 // pred_check_branch
          %290 = sbr.rel (%p288) target = $region48
        $region47: #{tpu_custom_call.1} parent=39 // pred_region
          %291 = dma.done %s284, 256
        $region48: #{tpu_custom_call.1} parent=39 // pred_fallthru
          _
        %s292 = sand.u32 %s45, 1
        %s293 = scalar_lea.sflag [#allocation5], %s292
        %s294 = sand.u32 %s45, 1
        %s295 = smul.addr %s294, 16
        %s296 = scalar_lea.vmem [#allocation4], %s295
        %p297 = pneg %p58
        %p298 = pneg %p55
        %s299 = sand.u32 %s71, 1
        %s300 = scalar_lea.sflag [#allocation8], %s299
        %s301 = sand.u32 %s71, 1
        %s302 = smul.addr %s301, 16
        %s303 = scalar_lea.vmem [#allocation7], %s302
        %p304 = pneg %p84
        %p305 = pneg %p81
        %s306 = smul.u32 2, %s27
        %p307 = scmp.lt.s32.totalorder %s306, 1
        %s308 = scalar_select %p307, %s306, 1
        %s309 = smul.addr %s308, 8
        %s310 = scalar_lea.vmem %s2, %s309
        %p311 = pneg %p110
        %p312 = pneg %p107
        %s313 = smul.u32 2, %s27
        %p314 = scmp.lt.s32.totalorder %s313, 1
        %s315 = scalar_select %p314, %s313, 1
        %s316 = smul.addr %s315, 8
        %s317 = scalar_lea.vmem %s3, %s316
        %p318 = pneg %p136
        %p319 = pneg %p133
        %p320 = pneg %p157
        %p321 = pneg %p154
        %p322 = pneg %p183
        %p323 = pneg %p180
        %s324 = smul.u32 2, %s27
        %s325 = smul.u32 2, %s27
        %p326 = scmp.lt.s32.totalorder %s325, 1
        %s327 = scalar_select %p326, %s325, 1
        %s328 = smul.addr %s327, 8
        %s329 = scalar_lea.vmem %s2, %s328
        %s330 = smul.u32 2, %s27
        %s331 = smul.u32 2, %s27
        %p332 = scmp.lt.s32.totalorder %s331, 1
        %s333 = scalar_select %p332, %s331, 1
        %s334 = smul.addr %s333, 8
        %s335 = scalar_lea.vmem %s3, %s334
        %s336 = smul.u32 2, %s27
        %s337 = smul.u32 2, %s27
        %p338 = scmp.eq.s32.totalorder %s28, 0
        // Predicated region
        $region49: #{tpu_custom_call.1} parent=39 // pred_check
          %p339 = pneg %p338
        $region50: #{tpu_custom_call.1} parent=39 // pred_check_branch
          %341 = sbr.rel (%p339) target = $region52
        $region51: #{tpu_custom_call.1} parent=39 // pred_region
          %v342 = vld [vmem:[%s329] sm:$0xff]
          %v343 = vld [vmem:[%s329 + $0x8] sm:$0xff]
          %vm344 = vcmask 130048
          %345 = vst.msk [vmem:[#allocation2] sm:$0xff] %vm344, %v342
          %346 = vst.msk [vmem:[#allocation2 + $0x8] sm:$0xff] %vm344, %v343
          %v347 = vld [vmem:[%s335] sm:$0xff]
          %v348 = vld [vmem:[%s335 + $0x8] sm:$0xff]
          %349 = vst.msk [vmem:[#allocation3] sm:$0xff] %vm344, %v347
          %350 = vst.msk [vmem:[#allocation3 + $0x8] sm:$0xff] %vm344, %v348
        $region52: #{tpu_custom_call.1} parent=39 // pred_fallthru
          _
        %v351 = vld [vmem:[%s278] sm:$0xff]
        %v352 = vld [vmem:[%s278 + $0x8] sm:$0xff]
        %v353 = vld [vmem:[%s287] sm:$0xff]
        %v354 = vld [vmem:[%s287 + $0x8] sm:$0xff]
        %vm355 = vcmask 130048
        %v357 = vsel %vm355, %v351, 0
        %v360 = vsel %vm355, %v352, 0
        %362 = vmatprep.subr.mxu0 0.0
        %363 = vmatpush1.msra.mxu0 0.0
        %364 = vmatprep.subr.mxu0 0.0
        %365 = vmatpush1.msra.mxu0 0.0
        %366 = vmatprep.subr.mxu0 0.0
        %367 = vmatpush1.msra.mxu0 0.0
        %368 = vmatprep.subr.mxu0 0.0
        %369 = vmatpush1.msra.mxu0 0.0
        %370 = vmatprep.subr.mxu0 0.0
        %371 = vmatpush1.msra.mxu0 0.0
        %372 = vmatprep.subr.mxu0 0.0
        %373 = vmatpush1.msra.mxu0 0.0
        %374 = vmatprep.subr.mxu0 0.0
        %375 = vmatpush1.msra.mxu0 0.0
        %376 = vmatprep.subr.mxu0 0.0
        %377 = vmatpush1.msra.mxu0 0.0
        %378 = vmatprep.subr.mxu0 0.0
        %379 = vmatpush1.msra.mxu0 0.0
        %380 = vmatprep.subr.mxu0 0.0
        %381 = vmatpush1.msra.mxu0 0.0
        %382 = vmatprep.subr.mxu0 0.0
        %383 = vmatpush1.msra.mxu0 0.0
        %384 = vmatprep.subr.mxu0 0.0
        %385 = vmatpush1.msra.mxu0 0.0
        %386 = vmatprep.subr.mxu0 0.0
        %387 = vmatpush1.msra.mxu0 0.0
        %388 = vmatprep.subr.mxu0 0.0
        %389 = vmatpush1.msra.mxu0 0.0
        %390 = vmatprep.subr.mxu0 0.0
        %391 = vmatpush1.msra.mxu0 %v354
        %392 = vmatprep.subr.mxu0 0.0
        %393 = vmatpush1.msra.mxu0 %v353
        %394 = vmatprep.subr.mxu0 0.0
        %395 = vmatpush2.msra.mxu0 0.0
        %396 = vmatprep.subr.mxu0 0.0
        %397 = vmatpush2.msra.mxu0 0.0
        %398 = vmatprep.subr.mxu0 0.0
        %399 = vmatpush2.msra.mxu0 0.0
        %400 = vmatprep.subr.mxu0 0.0
        %401 = vmatpush2.msra.mxu0 0.0
        %402 = vmatprep.subr.mxu0 0.0
        %403 = vmatpush2.msra.mxu0 0.0
        %404 = vmatprep.subr.mxu0 0.0
        %405 = vmatpush2.msra.mxu0 0.0
        %406 = vmatprep.subr.mxu0 0.0
        %407 = vmatpush2.msra.mxu0 0.0
        %408 = vmatprep.subr.mxu0 0.0
        %409 = vmatpush2.msra.mxu0 0.0
        %410 = vmatprep.subr.mxu0 0.0
        %411 = vmatpush2.msra.mxu0 0.0
        %412 = vmatprep.subr.mxu0 0.0
        %413 = vmatpush2.msra.mxu0 0.0
        %414 = vmatprep.subr.mxu0 0.0
        %415 = vmatpush2.msra.mxu0 0.0
        %416 = vmatprep.subr.mxu0 0.0
        %417 = vmatpush2.msra.mxu0 0.0
        %418 = vmatprep.subr.mxu0 0.0
        %419 = vmatpush2.msra.mxu0 0.0
        %420 = vmatprep.subr.mxu0 0.0
        %421 = vmatpush2.msra.mxu0 0.0
        %422 = vmatprep.subr.mxu0 0.0
        %423 = vmatpush2.msra.mxu0 0.0
        %424 = vmatprep.subr.mxu0 0.0
        %425 = vmatpush2.msra.mxu0 0.0
        %426 = vmatprep.mubr.f32.mxu0 0.0
        %427 = vmatmul.mubr.f32.gmra.mxu0 %v357
        %v428 = vpop.f32.mrf.mxu0
        %v429 = vadd.f32 0.0, %v428
        %v430 = vpop.f32.mrf.mxu0
        %431 = vmatprep.mubr.f32.mxu0 0.0
        %432 = vmatmul.mubr.f32.gmra.mxu0 %v360
        %v433 = vpop.f32.mrf.mxu0
        %v434 = vadd.f32 0.0, %v433
        %v435 = vpop.f32.mrf.mxu0
        %436 = vdwg.mxu0
        %p437 = scmp.lt.s32.totalorder %s28, 3
        // Predicated region
        $region53: #{tpu_custom_call.1} parent=39 // pred_check
          %p438 = pneg %p437
        $region54: #{tpu_custom_call.1} parent=39 // pred_check_branch
          %440 = sbr.rel (%p438) target = $region56
        $region55: #{tpu_custom_call.1} parent=39 // pred_region
          %v441 = vld [vmem:[#allocation2] sm:$0xff]
          %v442 = vld [vmem:[#allocation2 + $0x8] sm:$0xff]
          %v443 = vadd.f32 %v441, %v429
          %v444 = vadd.f32 %v442, %v434
          %445 = vst.msk [vmem:[#allocation2] sm:$0xff] %vm355, %v443
          %446 = vst.msk [vmem:[#allocation2 + $0x8] sm:$0xff] %vm355, %v444
        $region56: #{tpu_custom_call.1} parent=39 // pred_fallthru
          _
        %p447 = scmp.ge.s32.totalorder %s28, 3
        // Predicated region
        $region57: #{tpu_custom_call.1} parent=39 // pred_check
          %p448 = pneg %p447
        $region58: #{tpu_custom_call.1} parent=39 // pred_check_branch
          %450 = sbr.rel (%p448) target = $region60
        $region59: #{tpu_custom_call.1} parent=39 // pred_region
          %v451 = vld [vmem:[#allocation3] sm:$0xff]
          %v452 = vld [vmem:[#allocation3 + $0x8] sm:$0xff]
          %v453 = vadd.f32 %v451, %v429
          %v454 = vadd.f32 %v452, %v434
          %455 = vst.msk [vmem:[#allocation3] sm:$0xff] %vm355, %v453
          %456 = vst.msk [vmem:[#allocation3 + $0x8] sm:$0xff] %vm355, %v454
        $region60: #{tpu_custom_call.1} parent=39 // pred_fallthru
          _
        %p457 = scmp.eq.s32.totalorder %s28, 6
        // Predicated region
        $region61: #{tpu_custom_call.1} parent=39 // pred_check
          %p458 = pneg %p457
        $region62: #{tpu_custom_call.1} parent=39 // pred_check_branch
          %460 = sbr.rel (%p458) target = $region64
        $region63: #{tpu_custom_call.1} parent=39 // pred_region
          %v461 = vld [vmem:[#allocation2] sm:$0xff]
          %v462 = vld [vmem:[#allocation2 + $0x8] sm:$0xff]
          %v463 = vld [vmem:[%s4] sm:$0xff]
          %v464 = vld [vmem:[%s4 + $0x8] sm:$0xff]
          %v465 = vld [vmem:[#allocation3] sm:$0xff]
          %v466 = vld [vmem:[#allocation3 + $0x8] sm:$0xff]
          %v467 = vld [vmem:[%s4 + $0x10] sm:$0xff]
          %v468 = vld [vmem:[%s4 + $0x18] sm:$0xff]
          %v470 = vsel %vm355, %v465, 0
          %v473 = vsel %vm355, %v466, 0
          %475 = vmatprep.subr.mxu0 0.0
          %476 = vmatpush1.msra.mxu0 0.0
          %477 = vmatprep.subr.mxu0 0.0
          %478 = vmatpush1.msra.mxu0 0.0
          %479 = vmatprep.subr.mxu0 0.0
          %480 = vmatpush1.msra.mxu0 0.0
          %481 = vmatprep.subr.mxu0 0.0
          %482 = vmatpush1.msra.mxu0 0.0
          %483 = vmatprep.subr.mxu0 0.0
          %484 = vmatpush1.msra.mxu0 0.0
          %485 = vmatprep.subr.mxu0 0.0
          %486 = vmatpush1.msra.mxu0 0.0
          %487 = vmatprep.subr.mxu0 0.0
          %488 = vmatpush1.msra.mxu0 0.0
          %489 = vmatprep.subr.mxu0 0.0
          %490 = vmatpush1.msra.mxu0 0.0
          %491 = vmatprep.subr.mxu0 0.0
          %492 = vmatpush1.msra.mxu0 0.0
          %493 = vmatprep.subr.mxu0 0.0
          %494 = vmatpush1.msra.mxu0 0.0
          %495 = vmatprep.subr.mxu0 0.0
          %496 = vmatpush1.msra.mxu0 0.0
          %497 = vmatprep.subr.mxu0 0.0
          %498 = vmatpush1.msra.mxu0 0.0
          %499 = vmatprep.subr.mxu0 0.0
          %500 = vmatpush1.msra.mxu0 0.0
          %501 = vmatprep.subr.mxu0 0.0
          %502 = vmatpush1.msra.mxu0 0.0
          %503 = vmatprep.subr.mxu0 0.0
          %504 = vmatpush1.msra.mxu0 %v468
          %505 = vmatprep.subr.mxu0 0.0
          %506 = vmatpush1.msra.mxu0 %v467
          %507 = vmatprep.subr.mxu0 0.0
          %508 = vmatpush2.msra.mxu0 0.0
          %509 = vmatprep.subr.mxu0 0.0
          %510 = vmatpush2.msra.mxu0 0.0
          %511 = vmatprep.subr.mxu0 0.0
          %512 = vmatpush2.msra.mxu0 0.0
          %513 = vmatprep.subr.mxu0 0.0
          %514 = vmatpush2.msra.mxu0 0.0
          %515 = vmatprep.subr.mxu0 0.0
          %516 = vmatpush2.msra.mxu0 0.0
          %517 = vmatprep.subr.mxu0 0.0
          %518 = vmatpush2.msra.mxu0 0.0
          %519 = vmatprep.subr.mxu0 0.0
          %520 = vmatpush2.msra.mxu0 0.0
          %521 = vmatprep.subr.mxu0 0.0
          %522 = vmatpush2.msra.mxu0 0.0
          %523 = vmatprep.subr.mxu0 0.0
          %524 = vmatpush2.msra.mxu0 0.0
          %525 = vmatprep.subr.mxu0 0.0
          %526 = vmatpush2.msra.mxu0 0.0
          %527 = vmatprep.subr.mxu0 0.0
          %528 = vmatpush2.msra.mxu0 0.0
          %529 = vmatprep.subr.mxu0 0.0
          %530 = vmatpush2.msra.mxu0 0.0
          %531 = vmatprep.subr.mxu0 0.0
          %532 = vmatpush2.msra.mxu0 0.0
          %533 = vmatprep.subr.mxu0 0.0
          %534 = vmatpush2.msra.mxu0 0.0
          %535 = vmatprep.subr.mxu0 0.0
          %536 = vmatpush2.msra.mxu0 0.0
          %537 = vmatprep.subr.mxu0 0.0
          %538 = vmatpush2.msra.mxu0 0.0
          %539 = vmatprep.mubr.f32.mxu0 0.0
          %540 = vmatmul.mubr.f32.gmra.mxu0 %v470
          %v541 = vpop.f32.mrf.mxu0
          %v542 = vadd.f32 0.0, %v541
          %v543 = vpop.f32.mrf.mxu0
          %544 = vmatprep.mubr.f32.mxu0 0.0
          %545 = vmatmul.mubr.f32.gmra.mxu0 %v473
          %v546 = vpop.f32.mrf.mxu0
          %v547 = vadd.f32 0.0, %v546
          %v548 = vpop.f32.mrf.mxu0
          %549 = vdwg.mxu0
          %v551 = vsel %vm355, %v461, 0
          %v554 = vsel %vm355, %v462, 0
          %556 = vmatprep.subr.mxu0 0.0
          %557 = vmatpush1.msra.mxu0 0.0
          %558 = vmatprep.subr.mxu0 0.0
          %559 = vmatpush1.msra.mxu0 0.0
          %560 = vmatprep.subr.mxu0 0.0
          %561 = vmatpush1.msra.mxu0 0.0
          %562 = vmatprep.subr.mxu0 0.0
          %563 = vmatpush1.msra.mxu0 0.0
          %564 = vmatprep.subr.mxu0 0.0
          %565 = vmatpush1.msra.mxu0 0.0
          %566 = vmatprep.subr.mxu0 0.0
          %567 = vmatpush1.msra.mxu0 0.0
          %568 = vmatprep.subr.mxu0 0.0
          %569 = vmatpush1.msra.mxu0 0.0
          %570 = vmatprep.subr.mxu0 0.0
          %571 = vmatpush1.msra.mxu0 0.0
          %572 = vmatprep.subr.mxu0 0.0
          %573 = vmatpush1.msra.mxu0 0.0
          %574 = vmatprep.subr.mxu0 0.0
          %575 = vmatpush1.msra.mxu0 0.0
          %576 = vmatprep.subr.mxu0 0.0
          %577 = vmatpush1.msra.mxu0 0.0
          %578 = vmatprep.subr.mxu0 0.0
          %579 = vmatpush1.msra.mxu0 0.0
          %580 = vmatprep.subr.mxu0 0.0
          %581 = vmatpush1.msra.mxu0 0.0
          %582 = vmatprep.subr.mxu0 0.0
          %583 = vmatpush1.msra.mxu0 0.0
          %584 = vmatprep.subr.mxu0 0.0
          %585 = vmatpush1.msra.mxu0 %v464
          %586 = vmatprep.subr.mxu0 0.0
          %587 = vmatpush1.msra.mxu0 %v463
          %588 = vmatprep.subr.mxu0 0.0
          %589 = vmatpush2.msra.mxu0 0.0
          %590 = vmatprep.subr.mxu0 0.0
          %591 = vmatpush2.msra.mxu0 0.0
          %592 = vmatprep.subr.mxu0 0.0
          %593 = vmatpush2.msra.mxu0 0.0
          %594 = vmatprep.subr.mxu0 0.0
          %595 = vmatpush2.msra.mxu0 0.0
          %596 = vmatprep.subr.mxu0 0.0
          %597 = vmatpush2.msra.mxu0 0.0
          %598 = vmatprep.subr.mxu0 0.0
          %599 = vmatpush2.msra.mxu0 0.0
          %600 = vmatprep.subr.mxu0 0.0
          %601 = vmatpush2.msra.mxu0 0.0
          %602 = vmatprep.subr.mxu0 0.0
          %603 = vmatpush2.msra.mxu0 0.0
          %604 = vmatprep.subr.mxu0 0.0
          %605 = vmatpush2.msra.mxu0 0.0
          %606 = vmatprep.subr.mxu0 0.0
          %607 = vmatpush2.msra.mxu0 0.0
          %608 = vmatprep.subr.mxu0 0.0
          %609 = vmatpush2.msra.mxu0 0.0
          %610 = vmatprep.subr.mxu0 0.0
          %611 = vmatpush2.msra.mxu0 0.0
          %612 = vmatprep.subr.mxu0 0.0
          %613 = vmatpush2.msra.mxu0 0.0
          %614 = vmatprep.subr.mxu0 0.0
          %615 = vmatpush2.msra.mxu0 0.0
          %616 = vmatprep.subr.mxu0 0.0
          %617 = vmatpush2.msra.mxu0 0.0
          %618 = vmatprep.subr.mxu0 0.0
          %619 = vmatpush2.msra.mxu0 0.0
          %620 = vmatprep.mubr.f32.mxu0 0.0
          %621 = vmatmul.mubr.f32.gmra.mxu0 %v551
          %v622 = vpop.f32.mrf.mxu0
          %v623 = vadd.f32 %v542, %v622
          %v624 = vpop.f32.mrf.mxu0
          %625 = vmatprep.mubr.f32.mxu0 0.0
          %626 = vmatmul.mubr.f32.gmra.mxu0 %v554
          %v627 = vpop.f32.mrf.mxu0
          %v628 = vadd.f32 %v547, %v627
          %v629 = vpop.f32.mrf.mxu0
          %630 = vdwg.mxu0
          %631 = vst.msk [vmem:[#allocation9] sm:$0xff] %vm355, %v623
          %632 = vst.msk [vmem:[#allocation9 + $0x8] sm:$0xff] %vm355, %v628
        $region64: #{tpu_custom_call.1} parent=39 // pred_fallthru
          _
        // Predicated region
        $region65: #{tpu_custom_call.1} parent=39 // pred_check
          %p633 = pneg %p180
        $region66: #{tpu_custom_call.1} parent=39 // pred_check_branch
          %635 = sbr.rel (%p633) target = $region68
        $region67: #{tpu_custom_call.1} parent=39 // pred_region
          %s636 = smul.u32 2, %s27
          %s638 = ssub.s32 256, 256
          %639 = vsyncadd [#allocation6], %s638
          %s640 = smul.addr %s636, 128
          %s641 = scalar_lea.hbm %s5, %s640
          %s642 = sshll.u32 [#allocation9], 4
          %s643 = int_to_ptr.vmem [resolvable:$true] %s642
          %648 = dma.vmem_to_hbm [thread:$0]  %s643, 256, %s641, [#allocation6], 128, 128, 8
        $region68: #{tpu_custom_call.1} parent=39 // pred_fallthru
          _
        // Predicated region
        $region69: #{tpu_custom_call.1} parent=39 // pred_check
          %p649 = pneg %p180
        $region70: #{tpu_custom_call.1} parent=39 // pred_check_branch
          %651 = sbr.rel (%p649) target = $region72
        $region71: #{tpu_custom_call.1} parent=39 // pred_region
          %652 = dma.done [#allocation6], 256
        $region72: #{tpu_custom_call.1} parent=39 // pred_fallthru
          _
      $region40: #{tpu_custom_call.1} parent=5 // pred_fallthru
        _
      %p653 = scmp.le.s32.totalorder 2, %s18
      // Predicated region
      $region73: #{tpu_custom_call.1} parent=5 // pred_check
        %p654 = pneg %p653
      $region74: #{tpu_custom_call.1} parent=5 // pred_check_branch
        %656 = sbr.rel (%p654) target = $region76
      $region75: #{tpu_custom_call.1} parent=5 // pred_region
        %s657 = ssub.s32 %s18, 2
      $region76: #{tpu_custom_call.1} parent=5 // pred_fallthru
        _
    $region6: #{tpu_custom_call.1} parent=1 // loop_footer
      %s22 = sadd.s32 1, %s18
    $region7: #{tpu_custom_call.1} parent=1 // loop_footer_branch
      %17 = sbr.rel target = $region3
    $region8: #{tpu_custom_call.1} parent=1 // loop_exit
      _
    %658 = vsyncpa [#allocation5], 1
    %s659 = scalar_lea.sflag [#allocation5], 1
    %660 = vsyncpa %s659, 1
    %661 = vsyncpa [#allocation8], 1
    %s662 = scalar_lea.sflag [#allocation8], 1
    %663 = vsyncpa %s662, 1
    %664 = vsyncpa [#allocation6], 1
    %s665 = scalar_lea.sflag [#allocation6], 1
    %666 = vsyncpa %s665, 1

</llo_original>
